<compile_context>
chip_gen: v7x
topology: tpu7x:2x2x1
jax: 0.10.0
libtpu: 0.0.40
codegen_flags: <defaults>
</compile_context>

<pallas_src>
import functools

import jax
import jax.numpy as jnp
import numpy as np
from jax.experimental import pallas as pl
from jax.experimental.pallas import tpu as pltpu


def _round_up(x: int, m: int) -> int:
    return -(-x // m) * m


def _vmem_block_bytes(tb, sp, e, hp, seq_isz, mask_isz):
    """Rough per-grid-step VMEM footprint for batch tile `tb`."""
    return (2 * tb * sp * e * seq_isz        # double-buffered seqs block
            + 2 * tb * sp * mask_isz         # double-buffered mask block
            + 2 * tb * e * 4                 # double-buffered output block
            + tb * sp * e * 2                # bf16 cast of the block (MXU lhs)
            + tb * sp * hp * (4 + 2)         # f32 h + bf16 h intermediates
            + 2 * (e * hp + 3 * hp) * 4)     # weights (double-buffer worst case)


def _pick_block_b(B, sp, e, hp, seq_isz, mask_isz, budget_bytes):
    """Largest multiple-of-8 batch tile under the VMEM budget, additionally
    capped so the grid has >= 2 steps (v7x has 2 TensorCores)."""
    if B <= 8:
        return B
    hi = (B // 8) * 8                                    # keep block <= array
    hi = min(hi, max(8, _round_up(pl.cdiv(B, 2), 8)))    # >= 2 grid steps
    hi = min(hi, 1024)
    tb = 8
    for cand in range(16, hi + 1, 8):
        if _vmem_block_bytes(cand, sp, e, hp, seq_isz, mask_isz) <= budget_bytes:
            tb = cand
        else:
            break
    return tb


def _self_attend_kernel(*refs, seq_len, has_mask, matmul_dtype, tanh_dtype,
                        approx_recip):
    if has_mask:
        seqs_ref, mask_ref, w1_ref, b1_ref, w2_ref, out_ref = refs
    else:
        seqs_ref, w1_ref, b1_ref, w2_ref, out_ref = refs
        mask_ref = None

    TB, Sp, E = seqs_ref.shape

    # ---- gate MLP: ONE MXU matmul over the flattened TB*Sp rows ----
    xm = seqs_ref[...].reshape(TB * Sp, E).astype(matmul_dtype)
    w1 = w1_ref[...].astype(matmul_dtype)
    h = jnp.dot(xm, w1, preferred_element_type=jnp.float32) + b1_ref[...]
    # tanh in f32 by default (portable: v5e has no bf16 EUP); on v6e/v7x the
    # caller may pass tanh_dtype=bfloat16 to ~double EUP throughput.
    h = jnp.tanh(h.astype(tanh_dtype)).astype(matmul_dtype)

    # gate Linear(H -> 1) on the otherwise-idle MXU (was VPU mult + XLU reduce)
    gates = jnp.dot(h, w2_ref[...].astype(matmul_dtype),
                    preferred_element_type=jnp.float32)        # [TB*Sp, 1]
    gates = gates.reshape(TB, Sp, 1)
    # (gate bias b2 omitted: softmax shift-invariance makes it a no-op)

    # masked_fill(mask == 0, -1e9), exactly like the PyTorch module
    if has_mask:
        gates = jnp.where(mask_ref[...] == 0, jnp.float32(-1e9), gates)

    # Seq-padding rows (only present when S % 8 != 0) get -inf so even a
    # fully-masked real row degrades to uniform over S (module semantics).
    if Sp != seq_len:
        valid = jax.lax.broadcasted_iota(jnp.int32, (TB, Sp, 1), 1) < seq_len
        gates = jnp.where(valid, gates, -jnp.inf)

    # softmax over the sequence axis, batched over the TB rows
    m = jnp.max(gates, axis=1, keepdims=True)                  # [TB, 1, 1]
    e = jnp.exp(gates - m)
    denom = jnp.sum(e, axis=1, keepdims=True)                  # [TB, 1, 1]
    if approx_recip:
        p_attn = e * pl.reciprocal(denom, approx=True)         # EUP slot
    else:
        p_attn = e / denom                                     # exact (f32 path)

    # attention-weighted sum over the sequence -> [TB, E].  Re-read the input
    # ref here (already resident in VMEM) instead of keeping the value loaded
    # at the top of the body alive across the whole kernel.
    x = seqs_ref[...].astype(jnp.float32)
    out_ref[...] = jnp.sum(x * p_attn, axis=1).astype(out_ref.dtype)


def self_attend(seqs, seq_masks, w1, b1, w2, b2=None, *,
                block_b=None, matmul_dtype=jnp.bfloat16,
                tanh_dtype=jnp.float32,
                vmem_block_budget_bytes=12 * 1024 * 1024):
    """seqs: [B, S, E] (f32 or bf16), seq_masks: [B, S] (1/0) or None.
    Returns [B, E] in seqs.dtype."""
    del b2  # softmax shift-invariance: the gate bias cannot change the output
    B, S, E = seqs.shape
    H = w1.shape[1]
    Hp = _round_up(H, 128)       # pad gate hidden dim to a lane multiple
    Sp = _round_up(S, 8)         # sublane multiple (no copy when S % 8 == 0)

    has_mask = seq_masks is not None

    # Common case S % 8 == 0: stream seqs exactly as given (no pad, no dtype
    # cast -> no extra HBM pass over the dominant [B, S, E] tensor).
    if Sp != S:
        # TODO(synk): for S % 8 != 0 (and very long S), a seq-chunk grid axis
        # with an online-softmax accumulator would avoid this extra HBM pass.
        seqs_in = jnp.pad(seqs, ((0, 0), (0, Sp - S), (0, 0)))
    else:
        seqs_in = seqs

    if has_mask:
        mask_in = seq_masks.astype(jnp.int32)                  # tiny vs. seqs
        if Sp != S:
            mask_in = jnp.pad(mask_in, ((0, 0), (0, Sp - S)))
        mask_in = mask_in.reshape(B, Sp, 1)
        mask_isz = 4
    else:
        mask_isz = 0

    # Small weight tensors: pad H -> Hp once (negligible traffic).
    w1_p = jnp.pad(w1.astype(jnp.float32), ((0, 0), (0, Hp - H)))
    b1_p = jnp.pad(b1.astype(jnp.float32).reshape(-1), (0, Hp - H)).reshape(1, Hp)
    w2_p = jnp.pad(w2.astype(jnp.float32).reshape(-1, 1), ((0, Hp - H), (0, 0)))

    seq_isz = jnp.dtype(seqs_in.dtype).itemsize
    if block_b is None:
        TB = _pick_block_b(B, Sp, E, Hp, seq_isz, mask_isz,
                           vmem_block_budget_bytes)
    else:
        TB = B if B <= 8 else max(8, min((B // 8) * 8, _round_up(block_b, 8)))

    grid = (pl.cdiv(B, TB),)     # ceil-div grid: no batch padding in HBM

    kernel = functools.partial(
        _self_attend_kernel,
        seq_len=S,
        has_mask=has_mask,
        matmul_dtype=matmul_dtype,
        tanh_dtype=tanh_dtype,
        approx_recip=bool(jnp.dtype(matmul_dtype) != jnp.dtype(jnp.float32)),
    )

    in_specs = [pl.BlockSpec((TB, Sp, E), lambda b: (b, 0, 0))]    # seqs block
    args = [seqs_in]
    if has_mask:
        in_specs.append(pl.BlockSpec((TB, Sp, 1), lambda b: (b, 0, 0)))
        args.append(mask_in)
    in_specs += [
        pl.BlockSpec((E, Hp), lambda b: (0, 0)),     # w1 (fetched once)
        pl.BlockSpec((1, Hp), lambda b: (0, 0)),     # b1
        pl.BlockSpec((Hp, 1), lambda b: (0, 0)),     # w2 column (MXU rhs)
    ]
    args += [w1_p, b1_p, w2_p]

    return pl.pallas_call(
        kernel,
        out_shape=jax.ShapeDtypeStruct((B, E), seqs.dtype),
        grid_spec=pltpu.PrefetchScalarGridSpec(
            num_scalar_prefetch=0,
            grid=grid,
            in_specs=in_specs,
            out_specs=pl.BlockSpec((TB, E), lambda b: (b, 0)),  # lane-dense out
        ),
        compiler_params=pltpu.CompilerParams(
            dimension_semantics=("parallel",),
            vmem_limit_bytes=32 * 1024 * 1024),
    )(*args)


def _reference(seqs, seq_masks, w1, b1, w2, b2):
    h = jnp.tanh(seqs @ w1 + b1)                 # [B, S, H]
    gates = (h @ w2).squeeze(-1) + b2[0]         # [B, S]
    gates = jnp.where(seq_masks == 0, -1e9, gates)
    p = jax.nn.softmax(gates, axis=-1)[..., None]
    return jnp.sum(seqs * p, axis=1)             # [B, E]


if __name__ == "__main__":
    B, S, E, H = 2, 8, 32, 200

    key = jax.random.PRNGKey(0)
    k_seq, k_w1, k_b1, k_w2, k_b2 = jax.random.split(key, 5)

    seqs = jax.random.normal(k_seq, (B, S, E), dtype=jnp.float32)

    # Deterministic parameter init (uniform, PyTorch-Linear-style bounds).
    lim1 = 1.0 / np.sqrt(E)
    w1 = jax.random.uniform(k_w1, (E, H), jnp.float32, -lim1, lim1)
    b1 = jax.random.uniform(k_b1, (H,), jnp.float32, -lim1, lim1)
    lim2 = 1.0 / np.sqrt(H)
    w2 = jax.random.uniform(k_w2, (H, 1), jnp.float32, -lim2, lim2)
    b2 = jax.random.uniform(k_b2, (1,), jnp.float32, -lim2, lim2)

    # Mask out the tail of the second sequence to exercise masked_fill.
    seq_masks = jnp.array([[1] * S, [1] * (S - 3) + [0] * 3], dtype=jnp.int32)

    ref = _reference(seqs, seq_masks.astype(jnp.float32), w1, b1, w2, b2)

    # 1) f32 matmul path: tight-tolerance validation against the reference.
    out_f32 = self_attend(seqs, seq_masks, w1, b1, w2, b2,
                          matmul_dtype=jnp.float32)
    out_f32 = jax.block_until_ready(out_f32)
    np.testing.assert_allclose(np.asarray(out_f32), np.asarray(ref),
                               rtol=1e-4, atol=1e-4)

    # 2) Default bf16-MXU path (v5e/v6e/v7x fast path): looser tolerance.
    out_bf16 = self_attend(seqs, seq_masks, w1, b1, w2, b2)
    out_bf16 = jax.block_until_ready(out_bf16)
    np.testing.assert_allclose(np.asarray(out_bf16), np.asarray(ref),
                               rtol=2e-2, atol=2e-2)

    print("KERNEL_OK")
</pallas_src>

<mosaic_0001>
module attributes {stable_mosaic.version = 11 : i64} {
  func.func @_self_attend_kernel(%arg0: i32, %arg1: memref<2x8x32xf32, #tpu.memory_space<vmem>>, %arg2: memref<2x8x1xi32, #tpu.memory_space<vmem>>, %arg3: memref<32x256xf32, #tpu.memory_space<vmem>>, %arg4: memref<1x256xf32, #tpu.memory_space<vmem>>, %arg5: memref<256x1xf32, #tpu.memory_space<vmem>>, %arg6: memref<2x32xf32, #tpu.memory_space<vmem>>) attributes {dimension_semantics = [#tpu.dimension_semantics<parallel>], iteration_bounds = array<i64: 1>, scalar_prefetch = 0 : i64, scratch_operands = 0 : i64, tpu.core_type = #tpu.core_type<tc>, window_params = [{transform_indices = @transform_0, window_bounds = array<i64: 2, 8, 32>}, {transform_indices = @transform_1, window_bounds = array<i64: 2, 8, 1>}, {pipeline_mode = #tpu.pipeline_mode<synchronous>, transform_indices = @transform_2, window_bounds = array<i64: 32, 256>}, {pipeline_mode = #tpu.pipeline_mode<synchronous>, transform_indices = @transform_3, window_bounds = array<i64: 1, 256>}, {pipeline_mode = #tpu.pipeline_mode<synchronous>, transform_indices = @transform_4, window_bounds = array<i64: 256, 1>}, {transform_indices = @transform_5, window_bounds = array<i64: 2, 32>}]} {
    %c0 = arith.constant 0 : index
    %c0_0 = arith.constant 0 : index
    %c0_1 = arith.constant 0 : index
    %0 = vector.load %arg1[%c0, %c0_0, %c0_1] : memref<2x8x32xf32, #tpu.memory_space<vmem>>, vector<2x8x32xf32>
    %1 = vector.shape_cast %0 : vector<2x8x32xf32> to vector<16x32xf32>
    %c0_2 = arith.constant 0 : index
    %c0_3 = arith.constant 0 : index
    %2 = vector.load %arg3[%c0_2, %c0_3] : memref<32x256xf32, #tpu.memory_space<vmem>>, vector<32x256xf32>
    %cst = arith.constant dense<0.000000e+00> : vector<16x256xf32>
    %3 = tpu.matmul %1, %2, %cst {dimension_numbers = #tpu.dot_dimension_numbers<[1], [0], [0], [1], [0, 0, 1, 1], [], []>} : vector<16x32xf32>, vector<32x256xf32>, vector<16x256xf32> -> vector<16x256xf32>
    %c0_4 = arith.constant 0 : index
    %c0_5 = arith.constant 0 : index
    %4 = vector.load %arg4[%c0_4, %c0_5] : memref<1x256xf32, #tpu.memory_space<vmem>>, vector<1x256xf32>
    %5 = vector.broadcast %4 : vector<1x256xf32> to vector<16x256xf32>
    %6 = arith.addf %3, %5 : vector<16x256xf32>
    %7 = math.tanh %6 : vector<16x256xf32>
    %c0_6 = arith.constant 0 : index
    %c0_7 = arith.constant 0 : index
    %8 = vector.load %arg5[%c0_6, %c0_7] : memref<256x1xf32, #tpu.memory_space<vmem>>, vector<256x1xf32>
    %cst_8 = arith.constant dense<0.000000e+00> : vector<16x1xf32>
    %9 = tpu.matmul %7, %8, %cst_8 {dimension_numbers = #tpu.dot_dimension_numbers<[1], [0], [0], [1], [0, 0, 1, 1], [], []>} : vector<16x256xf32>, vector<256x1xf32>, vector<16x1xf32> -> vector<16x1xf32>
    %10 = vector.shape_cast %9 : vector<16x1xf32> to vector<2x8x1xf32>
    %c0_9 = arith.constant 0 : index
    %c0_10 = arith.constant 0 : index
    %c0_11 = arith.constant 0 : index
    %11 = vector.load %arg2[%c0_9, %c0_10, %c0_11] : memref<2x8x1xi32, #tpu.memory_space<vmem>>, vector<2x8x1xi32>
    %c0_i32 = arith.constant 0 : i32
    %12 = vector.broadcast %c0_i32 : i32 to vector<2x8x1xi32>
    %13 = arith.cmpi eq, %11, %12 : vector<2x8x1xi32>
    %cst_12 = arith.constant -1.000000e+09 : f32
    %14 = vector.broadcast %cst_12 : f32 to vector<2x8x1xf32>
    %15 = arith.select %13, %14, %10 : vector<2x8x1xi1>, vector<2x8x1xf32>
    %cst_13 = arith.constant dense<0xFF800000> : vector<2x1xf32>
    %16 = vector.multi_reduction <maximumf>, %15, %cst_13 [1] : vector<2x8x1xf32> to vector<2x1xf32>
    %17 = vector.shape_cast %16 : vector<2x1xf32> to vector<2x1x1xf32>
    %18 = vector.broadcast %17 : vector<2x1x1xf32> to vector<2x8x1xf32>
    %19 = arith.subf %15, %18 : vector<2x8x1xf32>
    %20 = math.exp %19 : vector<2x8x1xf32>
    %cst_14 = arith.constant dense<0.000000e+00> : vector<2x1xf32>
    %21 = vector.multi_reduction <add>, %20, %cst_14 [1] : vector<2x8x1xf32> to vector<2x1xf32>
    %22 = vector.shape_cast %21 : vector<2x1xf32> to vector<2x1x1xf32>
    %23 = vector.broadcast %22 : vector<2x1x1xf32> to vector<2x8x1xf32>
    %24 = arith.divf %20, %23 : vector<2x8x1xf32>
    %c0_15 = arith.constant 0 : index
    %c0_16 = arith.constant 0 : index
    %c0_17 = arith.constant 0 : index
    %25 = vector.load %arg1[%c0_15, %c0_16, %c0_17] : memref<2x8x32xf32, #tpu.memory_space<vmem>>, vector<2x8x32xf32>
    %26 = vector.broadcast %24 : vector<2x8x1xf32> to vector<2x8x32xf32>
    %27 = arith.mulf %25, %26 : vector<2x8x32xf32>
    %cst_18 = arith.constant dense<0.000000e+00> : vector<2x32xf32>
    %28 = vector.multi_reduction <add>, %27, %cst_18 [1] : vector<2x8x32xf32> to vector<2x32xf32>
    %c0_19 = arith.constant 0 : index
    %c0_20 = arith.constant 0 : index
    %29 = vector.load %arg6[%c0_19, %c0_20] : memref<2x32xf32, #tpu.memory_space<vmem>>, vector<2x32xf32>
    tpu.vector_store %arg6[%c0_19, %c0_20], %28 {strides = array<i32>} : memref<2x32xf32, #tpu.memory_space<vmem>>, vector<2x32xf32>,
    return
  }
  func.func @transform_0(%arg0: i32) -> (i32, i32, i32) {
    %c0_i32 = arith.constant 0 : i32
    %c0_i32_0 = arith.constant 0 : i32
    %c0_i32_1 = arith.constant 0 : i32
    return %arg0, %c0_i32, %c0_i32_0 : i32, i32, i32
  }
  func.func @transform_1(%arg0: i32) -> (i32, i32, i32) {
    %c0_i32 = arith.constant 0 : i32
    %c0_i32_0 = arith.constant 0 : i32
    %c0_i32_1 = arith.constant 0 : i32
    return %arg0, %c0_i32, %c0_i32_0 : i32, i32, i32
  }
  func.func @transform_2(%arg0: i32) -> (i32, i32) {
    %c0_i32 = arith.constant 0 : i32
    %c0_i32_0 = arith.constant 0 : i32
    %c0_i32_1 = arith.constant 0 : i32
    return %c0_i32, %c0_i32_0 : i32, i32
  }
  func.func @transform_3(%arg0: i32) -> (i32, i32) {
    %c0_i32 = arith.constant 0 : i32
    %c0_i32_0 = arith.constant 0 : i32
    %c0_i32_1 = arith.constant 0 : i32
    return %c0_i32, %c0_i32_0 : i32, i32
  }
  func.func @transform_4(%arg0: i32) -> (i32, i32) {
    %c0_i32 = arith.constant 0 : i32
    %c0_i32_0 = arith.constant 0 : i32
    %c0_i32_1 = arith.constant 0 : i32
    return %c0_i32, %c0_i32_0 : i32, i32
  }
  func.func @transform_5(%arg0: i32) -> (i32, i32) {
    %c0_i32 = arith.constant 0 : i32
    %c0_i32_0 = arith.constant 0 : i32
    return %arg0, %c0_i32 : i32, i32
  }
}

</mosaic_0001>

<llo_original>
// kernel: tpu_custom_call.1
$region0: #{tpu_custom_call.1}
  #allocation0 [shape = 'u32[]', space=smem, size = 0x4, offset = 0x4, fixed_abs, tag = 'smem constant byte address 0x4 - core index']
  #allocation1 [shape = 'u32[144,128]{1,0:T(1,128)}', space=vmem, size = 0x12000, scoped, tag = 'internal scratch']
  %s0 = inlined_call_operand.vmem [shape: f32[2,8,32], index: 0, kind: input, shape index: {}]
  %s1 = inlined_call_operand.vmem [shape: s32[2,8,1], index: 1, kind: input, shape index: {}]
  %s2 = inlined_call_operand.vmem [shape: f32[32,256], index: 2, kind: input, shape index: {}]
  %s3 = inlined_call_operand.vmem [shape: f32[1,256], index: 3, kind: input, shape index: {}]
  %s4 = inlined_call_operand.vmem [shape: f32[256,1], index: 4, kind: input, shape index: {}]
  %s5 = inlined_call_operand.hbm [shape: f32[2,32], index: 5, kind: output, shape index: {}]
  %s6 = sld [smem:[#allocation0]]
  $region30: #{tpu_custom_call.1} parent=0
    _
  %s8 = ssub.s32 1, %s6
  %s9 = scalar_select 0, %s8, %s6
  $region1: #{tpu_custom_call.1} parent=0
    #allocation2 [shape = 'u8[1024]{0}', space=vmem, size = 0x400, scoped, tag = 'output window, operand 0, single buffered']
    #allocation3 [shape = 's32[1]{0}', space=sflag, size = 0x4, scoped, tag = 'scoped memory for tpu_custom_call.1']
    %10 = vsyncpa [#allocation3], 0
    // Predicated region
    $region2: #{tpu_custom_call.1} parent=1 // pred_check
      _
    $region3: #{tpu_custom_call.1} parent=1 // pred_check_branch
      %12 = sbr.rel (0) target = $region5
    $region4: #{tpu_custom_call.1} parent=1 // pred_region
      _
    $region5: #{tpu_custom_call.1} parent=1 // pred_fallthru
      _
    // Predicated region
    $region6: #{tpu_custom_call.1} parent=1 // pred_check
      _
    $region7: #{tpu_custom_call.1} parent=1 // pred_check_branch
      %14 = sbr.rel (0) target = $region9
    $region8: #{tpu_custom_call.1} parent=1 // pred_region
      _
    $region9: #{tpu_custom_call.1} parent=1 // pred_fallthru
      _
    // Predicated region
    $region10: #{tpu_custom_call.1} parent=1 // pred_check
      _
    $region11: #{tpu_custom_call.1} parent=1 // pred_check_branch
      %16 = sbr.rel (0) target = $region13
    $region12: #{tpu_custom_call.1} parent=1 // pred_region
      _
    $region13: #{tpu_custom_call.1} parent=1 // pred_fallthru
      _
    // Predicated region
    $region14: #{tpu_custom_call.1} parent=1 // pred_check
      _
    $region15: #{tpu_custom_call.1} parent=1 // pred_check_branch
      %18 = sbr.rel (0) target = $region17
    $region16: #{tpu_custom_call.1} parent=1 // pred_region
      _
    $region17: #{tpu_custom_call.1} parent=1 // pred_fallthru
      _
    // Predicated region
    $region18: #{tpu_custom_call.1} parent=1 // pred_check
      _
    $region19: #{tpu_custom_call.1} parent=1 // pred_check_branch
      %20 = sbr.rel (0) target = $region21
    $region20: #{tpu_custom_call.1} parent=1 // pred_region
      _
    $region21: #{tpu_custom_call.1} parent=1 // pred_fallthru
      _
    %v21 = vld [vmem:[%s0] sm:$0xff]
    %v22 = vld [vmem:[%s0 + $0x8] sm:$0xff]
    %v23 = vld [vmem:[%s2] sm:$0xff]
    %v24 = vld [vmem:[%s2 + $0x8] sm:$0xff]
    %v25 = vld [vmem:[%s2 + $0x10] sm:$0xff]
    %v26 = vld [vmem:[%s2 + $0x18] sm:$0xff]
    %v27 = vld [vmem:[%s2 + $0x20] sm:$0xff]
    %v28 = vld [vmem:[%s2 + $0x28] sm:$0xff]
    %v29 = vld [vmem:[%s2 + $0x30] sm:$0xff]
    %v30 = vld [vmem:[%s2 + $0x38] sm:$0xff]
    %v31 = vld [vmem:[%s3] sm:$0x3]
    %v33 = vlaneseq
    %v34 = vshrl.u32 %v33, 7
    %v35 = vsub.s32 0, %v34
    %v36 = vrot.slane %v31, %v35
    %v37 = vlaneseq
    %v38 = vshrl.u32 %v37, 7
    %v39 = vsub.s32 1, %v38
    %v40 = vrot.slane %v31, %v39
    %vm43 = vcmask 261120
    %v45 = vsel %vm43, %v21, 0
    %v48 = vsel %vm43, %v22, 0
    %50 = vmatprep.subr.mxu0 %v24
    %51 = vmatpush1.msra.mxu0 %v23
    %52 = vmatprep.subr.mxu0 %v26
    %53 = vmatpush1.msra.mxu0 %v25
    %54 = vmatprep.subr.mxu0 %v28
    %55 = vmatpush1.msra.mxu0 %v27
    %56 = vmatprep.subr.mxu0 %v30
    %57 = vmatpush1.msra.mxu0 %v29
    %58 = vmatprep.subr.mxu0 0.0
    %59 = vmatpush1.msra.mxu0 0.0
    %60 = vmatprep.subr.mxu0 0.0
    %61 = vmatpush1.msra.mxu0 0.0
    %62 = vmatprep.subr.mxu0 0.0
    %63 = vmatpush1.msra.mxu0 0.0
    %64 = vmatprep.subr.mxu0 0.0
    %65 = vmatpush1.msra.mxu0 0.0
    %66 = vmatprep.subr.mxu0 0.0
    %67 = vmatpush1.msra.mxu0 0.0
    %68 = vmatprep.subr.mxu0 0.0
    %69 = vmatpush1.msra.mxu0 0.0
    %70 = vmatprep.subr.mxu0 0.0
    %71 = vmatpush1.msra.mxu0 0.0
    %72 = vmatprep.subr.mxu0 0.0
    %73 = vmatpush1.msra.mxu0 0.0
    %74 = vmatprep.subr.mxu0 0.0
    %75 = vmatpush1.msra.mxu0 0.0
    %76 = vmatprep.subr.mxu0 0.0
    %77 = vmatpush1.msra.mxu0 0.0
    %78 = vmatprep.subr.mxu0 0.0
    %79 = vmatpush1.msra.mxu0 0.0
    %80 = vmatprep.subr.mxu0 0.0
    %81 = vmatpush1.msra.mxu0 0.0
    %82 = vmatprep.subr.mxu0 0.0
    %83 = vmatpush1.msra.mxu0 0.0
    %84 = vmatprep.subr.mxu0 0.0
    %85 = vmatpush1.msra.mxu0 0.0
    %86 = vmatprep.subr.mxu0 0.0
    %87 = vmatpush1.msra.mxu0 0.0
    %88 = vmatprep.subr.mxu0 0.0
    %89 = vmatpush1.msra.mxu0 0.0
    %90 = vmatprep.subr.mxu0 0.0
    %91 = vmatpush1.msra.mxu0 0.0
    %92 = vmatprep.subr.mxu0 0.0
    %93 = vmatpush1.msra.mxu0 0.0
    %94 = vmatprep.subr.mxu0 0.0
    %95 = vmatpush1.msra.mxu0 0.0
    %96 = vmatprep.subr.mxu0 0.0
    %97 = vmatpush1.msra.mxu0 0.0
    %98 = vmatprep.subr.mxu0 0.0
    %99 = vmatpush1.msra.mxu0 0.0
    %100 = vmatprep.subr.mxu0 0.0
    %101 = vmatpush1.msra.mxu0 0.0
    %102 = vmatprep.subr.mxu0 0.0
    %103 = vmatpush1.msra.mxu0 0.0
    %104 = vmatprep.subr.mxu0 0.0
    %105 = vmatpush1.msra.mxu0 0.0
    %106 = vmatprep.subr.mxu0 0.0
    %107 = vmatpush1.msra.mxu0 0.0
    %108 = vmatprep.subr.mxu0 0.0
    %109 = vmatpush1.msra.mxu0 0.0
    %110 = vmatprep.subr.mxu0 0.0
    %111 = vmatpush1.msra.mxu0 0.0
    %112 = vmatprep.subr.mxu0 0.0
    %113 = vmatpush1.msra.mxu0 0.0
    %114 = vmatprep.mubr.f32.mxu0 0.0
    %115 = vmatmul.mubr.f32.gmra.mrb[0].mxu0 %v45
    %v116 = vpop.f32.mrb[0].mxu0
    %v117 = vadd.f32 %v36, %v116
    %v118 = vpop.f32.mrb[0].mxu0
    %v119 = vadd.f32 %v40, %v118
    %120 = vmatprep.mubr.f32.mxu0 0.0
    %121 = vmatmul.mubr.f32.gmra.mrb[0].mxu0 %v48
    %v122 = vpop.f32.mrb[0].mxu0
    %v123 = vadd.f32 %v36, %v122
    %v124 = vpop.f32.mrb[0].mxu0
    %v125 = vadd.f32 %v40, %v124
    %126 = vdwg.mxu0
    %v127 = vtanh.pop %v117
    %v128 = vtanh.pop %v119
    %v129 = vtanh.pop %v123
    %v130 = vtanh.pop %v125
    %v131 = vld [vmem:[%s4] sm:$0xff]
    %v132 = vld [vmem:[%s4 + $0x8] sm:$0xff]
    %v133 = vld [vmem:[%s4 + $0x10] sm:$0xff]
    %v134 = vld [vmem:[%s4 + $0x18] sm:$0xff]
    %v135 = vld [vmem:[%s4 + $0x20] sm:$0xff]
    %v136 = vld [vmem:[%s4 + $0x28] sm:$0xff]
    %v137 = vld [vmem:[%s4 + $0x30] sm:$0xff]
    %v138 = vld [vmem:[%s4 + $0x38] sm:$0xff]
    %v139 = vld [vmem:[%s4 + $0x40] sm:$0xff]
    %v140 = vld [vmem:[%s4 + $0x48] sm:$0xff]
    %v141 = vld [vmem:[%s4 + $0x50] sm:$0xff]
    %v142 = vld [vmem:[%s4 + $0x58] sm:$0xff]
    %v143 = vld [vmem:[%s4 + $0x60] sm:$0xff]
    %v144 = vld [vmem:[%s4 + $0x68] sm:$0xff]
    %v145 = vld [vmem:[%s4 + $0x70] sm:$0xff]
    %v146 = vld [vmem:[%s4 + $0x78] sm:$0xff]
    %v147 = vld [vmem:[%s4 + $0x80] sm:$0xff]
    %v148 = vld [vmem:[%s4 + $0x88] sm:$0xff]
    %v149 = vld [vmem:[%s4 + $0x90] sm:$0xff]
    %v150 = vld [vmem:[%s4 + $0x98] sm:$0xff]
    %v151 = vld [vmem:[%s4 + $0xa0] sm:$0xff]
    %v152 = vld [vmem:[%s4 + $0xa8] sm:$0xff]
    %v153 = vld [vmem:[%s4 + $0xb0] sm:$0xff]
    %v154 = vld [vmem:[%s4 + $0xb8] sm:$0xff]
    %v155 = vld [vmem:[%s4 + $0xc0] sm:$0xff]
    %v156 = vld [vmem:[%s4 + $0xc8] sm:$0xff]
    %v157 = vld [vmem:[%s4 + $0xd0] sm:$0xff]
    %v158 = vld [vmem:[%s4 + $0xd8] sm:$0xff]
    %v159 = vld [vmem:[%s4 + $0xe0] sm:$0xff]
    %v160 = vld [vmem:[%s4 + $0xe8] sm:$0xff]
    %v161 = vld [vmem:[%s4 + $0xf0] sm:$0xff]
    %v162 = vld [vmem:[%s4 + $0xf8] sm:$0xff]
    %163 = vmatprep.subr.mxu0 0.0
    %164 = vmatpush1.msra.mxu0 %v131
    %165 = vmatprep.subr.mxu0 0.0
    %166 = vmatpush1.msra.mxu0 %v132
    %167 = vmatprep.subr.mxu0 0.0
    %168 = vmatpush1.msra.mxu0 %v133
    %169 = vmatprep.subr.mxu0 0.0
    %170 = vmatpush1.msra.mxu0 %v134
    %171 = vmatprep.subr.mxu0 0.0
    %172 = vmatpush1.msra.mxu0 %v135
    %173 = vmatprep.subr.mxu0 0.0
    %174 = vmatpush1.msra.mxu0 %v136
    %175 = vmatprep.subr.mxu0 0.0
    %176 = vmatpush1.msra.mxu0 %v137
    %177 = vmatprep.subr.mxu0 0.0
    %178 = vmatpush1.msra.mxu0 %v138
    %179 = vmatprep.subr.mxu0 0.0
    %180 = vmatpush1.msra.mxu0 %v139
    %181 = vmatprep.subr.mxu0 0.0
    %182 = vmatpush1.msra.mxu0 %v140
    %183 = vmatprep.subr.mxu0 0.0
    %184 = vmatpush1.msra.mxu0 %v141
    %185 = vmatprep.subr.mxu0 0.0
    %186 = vmatpush1.msra.mxu0 %v142
    %187 = vmatprep.subr.mxu0 0.0
    %188 = vmatpush1.msra.mxu0 %v143
    %189 = vmatprep.subr.mxu0 0.0
    %190 = vmatpush1.msra.mxu0 %v144
    %191 = vmatprep.subr.mxu0 0.0
    %192 = vmatpush1.msra.mxu0 %v145
    %193 = vmatprep.subr.mxu0 0.0
    %194 = vmatpush1.msra.mxu0 %v146
    %195 = vmatprep.subr.mxu0 0.0
    %196 = vmatpush1.msra.mxu0 %v147
    %197 = vmatprep.subr.mxu0 0.0
    %198 = vmatpush1.msra.mxu0 %v148
    %199 = vmatprep.subr.mxu0 0.0
    %200 = vmatpush1.msra.mxu0 %v149
    %201 = vmatprep.subr.mxu0 0.0
    %202 = vmatpush1.msra.mxu0 %v150
    %203 = vmatprep.subr.mxu0 0.0
    %204 = vmatpush1.msra.mxu0 %v151
    %205 = vmatprep.subr.mxu0 0.0
    %206 = vmatpush1.msra.mxu0 %v152
    %207 = vmatprep.subr.mxu0 0.0
    %208 = vmatpush1.msra.mxu0 %v153
    %209 = vmatprep.subr.mxu0 0.0
    %210 = vmatpush1.msra.mxu0 %v154
    %211 = vmatprep.subr.mxu0 0.0
    %212 = vmatpush1.msra.mxu0 %v155
    %213 = vmatprep.subr.mxu0 0.0
    %214 = vmatpush1.msra.mxu0 %v156
    %215 = vmatprep.subr.mxu0 0.0
    %216 = vmatpush1.msra.mxu0 %v157
    %217 = vmatprep.subr.mxu0 0.0
    %218 = vmatpush1.msra.mxu0 %v158
    %219 = vmatprep.subr.mxu0 0.0
    %220 = vmatpush1.msra.mxu0 %v159
    %221 = vmatprep.subr.mxu0 0.0
    %222 = vmatpush1.msra.mxu0 %v160
    %223 = vmatprep.subr.mxu0 0.0
    %224 = vmatpush1.msra.mxu0 %v161
    %225 = vmatprep.subr.mxu0 0.0
    %226 = vmatpush1.msra.mxu0 %v162
    %227 = vmatprep.mubr.f32.mxu0 %v128
    %228 = vmatmul.mubr.f32.gmra.mrb[0].mxu0 %v127
    %v229 = vpop.f32.mrb[0].mxu0
    %v230 = vadd.f32 0.0, %v229
    %v231 = vpop.f32.mrb[0].mxu0
    %232 = vmatprep.mubr.f32.mxu0 %v130
    %233 = vmatmul.mubr.f32.gmra.mrb[0].mxu0 %v129
    %v234 = vpop.f32.mrb[0].mxu0
    %v235 = vadd.f32 0.0, %v234
    %v236 = vpop.f32.mrb[0].mxu0
    %237 = vdwg.mxu0
    %v238 = vld [vmem:[%s1] sm:$0xff]
    %v239 = vld [vmem:[%s1 + $0x8] sm:$0xff]
    %vm240 = vcmp.eq.s32.totalorder %v238, 0
    %vm241 = vcmp.eq.s32.totalorder %v239, 0
    %v242 = vsel %vm240, -1e+09, %v230
    %v243 = vsel %vm241, -1e+09, %v235
    %vm244 = vcmask 7168
    %v245 = vsel %vm244, %v242, -inf
    %v246 = vrot.slane %v245, 4
    %v247 = vmax.f32 %v245, %v246
    %v248 = vrot.slane %v247, 2
    %v249 = vmax.f32 %v247, %v248
    %v250 = vrot.slane %v249, 1
    %v251 = vmax.f32 %v249, %v250
    %v252 = vsel %vm244, %v243, -inf
    %v253 = vrot.slane %v252, 4
    %v254 = vmax.f32 %v252, %v253
    %v255 = vrot.slane %v254, 2
    %v256 = vmax.f32 %v254, %v255
    %v257 = vrot.slane %v256, 1
    %v258 = vmax.f32 %v256, %v257
    %v259 = vsub.f32 %v242, %v251
    %v260 = vsub.f32 %v243, %v258
    %v261 = vmul.f32 %v259, 1.442695
    %v262 = vpow.pop %v261
    %v263 = vmul.f32 %v260, 1.442695
    %v264 = vpow.pop %v263
    %v265 = vsel %vm244, %v262, 0.0
    %v266 = vrot.slane %v265, 4
    %v267 = vadd.f32 %v265, %v266
    %v268 = vrot.slane %v267, 2
    %v269 = vadd.f32 %v267, %v268
    %v270 = vrot.slane %v269, 1
    %v271 = vadd.f32 %v269, %v270
    %v272 = vsel %vm244, %v264, 0.0
    %v273 = vrot.slane %v272, 4
    %v274 = vadd.f32 %v272, %v273
    %v275 = vrot.slane %v274, 2
    %v276 = vadd.f32 %v274, %v275
    %v277 = vrot.slane %v276, 1
    %v278 = vadd.f32 %v276, %v277
    %v279 = vrcp.pop %v271
    %v280 = vmul.f32 %v262, %v279
    %v281 = vrcp.pop %v278
    %v282 = vmul.f32 %v264, %v281
    %284 = vset.pattern.permute.xlu0 0
    %285 = vperm.xlu0 %284, %v280
    %v286 = vpop.permute.xlu0 %285
    %289 = vset.pattern.permute.xlu0 0
    %290 = vperm.xlu0 %289, %v282
    %v291 = vpop.permute.xlu0 %290
    %v293 = vmul.f32 %v21, %v286
    %v294 = vmul.f32 %v22, %v291
    %v295 = vsel %vm43, %v293, 0.0
    %v296 = vrot.slane %v295, 4
    %v297 = vadd.f32 %v295, %v296
    %v298 = vrot.slane %v297, 2
    %v299 = vadd.f32 %v297, %v298
    %v300 = vrot.slane %v299, 1
    %v301 = vadd.f32 %v299, %v300
    %v302 = vsel %vm43, %v294, 0.0
    %v303 = vrot.slane %v302, 4
    %v304 = vadd.f32 %v302, %v303
    %v305 = vrot.slane %v304, 2
    %v306 = vadd.f32 %v304, %v305
    %v307 = vrot.slane %v306, 1
    %v308 = vadd.f32 %v306, %v307
    %vm311 = vcmask 1041409
    %v312 = vsel %vm311, %v308, %v301
    %vm314 = vcmask 254976
    %315 = vst.msk [vmem:[#allocation2] sm:$0x3] %vm314, %v312
    // Predicated region
    $region22: #{tpu_custom_call.1} parent=1 // pred_check
      _
    $region23: #{tpu_custom_call.1} parent=1 // pred_check_branch
      %317 = sbr.rel (0) target = $region25
    $region24: #{tpu_custom_call.1} parent=1 // pred_region
      %s319 = ssub.s32 32, 32
      %320 = vsyncadd [#allocation3], %s319
      %s322 = sshll.u32 [#allocation2], 4
      %s323 = int_to_ptr.vmem [resolvable:$true] %s322
      %325 = dma.vmem_to_hbm [thread:$0]  %s323, 32, %s5, [#allocation3]
    $region25: #{tpu_custom_call.1} parent=1 // pred_fallthru
      _
    // Predicated region
    $region26: #{tpu_custom_call.1} parent=1 // pred_check
      _
    $region27: #{tpu_custom_call.1} parent=1 // pred_check_branch
      %327 = sbr.rel (0) target = $region29
    $region28: #{tpu_custom_call.1} parent=1 // pred_region
      %328 = dma.done [#allocation3], 32
    $region29: #{tpu_custom_call.1} parent=1 // pred_fallthru
      _
    %329 = vsyncpa [#allocation3], 1

</llo_original>
